<compile_context>
chip_gen: v7x
topology: tpu7x:2x2x1
jax: 0.10.0
libtpu: 0.0.40
codegen_flags: <defaults>
</compile_context>

<pallas_src>
import functools

import jax
import jax.numpy as jnp
from jax.experimental import pallas as pl
from jax.experimental.pallas import tpu as pltpu


def e5_cls_kernel(h_ref, mask_ref, w1_ref, b1_ref, w2_ref, b2_ref, out_ref,
                  *, compute_dtype):
    # h_ref:    [TB, S, H]   last_hidden_state tile (source dtype, e.g. f32/bf16)
    # mask_ref: [TB, 1, S]   attention_mask as 0/1 in f32
    # w1_ref:   [H, 256] f32,  b1_ref: [1, 256] f32
    # w2_ref:   [256, 128] f32 (lane-padded from 40), b2_ref: [1, 128] f32
    # out_ref:  [TB, 128] f32 (lane-dense)
    mask_f32 = mask_ref[...]                                    # [TB, 1, S]
    mask_c = mask_f32.astype(compute_dtype)
    h_c = h_ref[...].astype(compute_dtype)                      # bf16 cast in-kernel

    # average_pool: masked sum over seq as a batched MXU matmul (f32 accumulation):
    #   pooled[t, 0, :] = sum_s mask[t, s] * h[t, s, :]
    pooled = jnp.einsum("tus,tsh->tuh", mask_c, h_c,
                        preferred_element_type=jnp.float32)     # [TB, 1, H]
    summed = pooled[:, 0, :]                                    # static slice (free)

    denom = jnp.sum(mask_f32, axis=2)                           # [TB, 1]
    denom = jnp.maximum(denom, 1.0)                             # guard all-zero masks
    emb = summed / denom                                        # exact divide, tiny

    # MLP head: Linear(768->256) + ReLU + Dropout(identity) + Linear(256->40, padded)
    z1 = jnp.dot(emb, w1_ref[...], preferred_element_type=jnp.float32) + b1_ref[...]
    z1 = jnp.maximum(z1, 0.0)
    logits = jnp.dot(z1, w2_ref[...], preferred_element_type=jnp.float32) + b2_ref[...]
    out_ref[...] = logits.astype(out_ref.dtype)


def _chip_vmem_limit():
    """Scoped-VMEM budget per chip generation (v7x: 64 MiB phys; v5e/v6e: 128 MiB)."""
    try:
        cap = getattr(pltpu.get_tpu_info(), "vmem_capacity_bytes", 64 * 1024 * 1024)
    except Exception:                       # conservative (v7x-sized) fallback
        cap = 64 * 1024 * 1024
    if cap >= 100 * 1024 * 1024:            # v5e / v6e (128 MiB physical VMEM)
        return 96 * 1024 * 1024
    return 48 * 1024 * 1024                 # v7x (64 MiB physical VMEM)


def _pick_block_b(B, S, H, h_itemsize, vmem_limit_bytes):
    """Largest batch tile whose double-buffered hidden-state stream fits ~70% of the
    VMEM budget (the rest covers resident weights, mask, output, slack)."""
    budget = int(vmem_limit_bytes * 0.7)
    bb = max(1, budget // (2 * S * H * h_itemsize))
    bb = min(bb, 32, B)
    if bb >= 8:
        bb = (bb // 8) * 8                  # keep the output block sublane-aligned
    elif bb < B:
        bb = min(8, B)                      # (8,128) rule on output's 2nd-minor dim
    return int(bb)


def e5_cls_forward(last_hidden_state, attention_mask, w1, b1, w2, b2,
                   *, block_b=None, vmem_limit_bytes=None,
                   compute_dtype=jnp.bfloat16):
    B, S, H = last_hidden_state.shape
    D1 = w1.shape[1]
    D2 = w2.shape[1]
    DP = pl.cdiv(D2, 128) * 128             # lane-dense padded logits width (40->128)

    if vmem_limit_bytes is None:
        vmem_limit_bytes = _chip_vmem_limit()
    h_itemsize = jnp.dtype(last_hidden_state.dtype).itemsize
    if block_b is None:
        block_b = _pick_block_b(B, S, H, h_itemsize, vmem_limit_bytes)

    # Hidden states stream at their source dtype (no wrapper cast / pad passes over
    # the dominant [B,S,H] tensor); mask / weights / biases are tiny, casts are free.
    mask3 = attention_mask.reshape(B, 1, S).astype(jnp.float32)
    w1f = w1.astype(jnp.float32)
    b1_2d = b1.astype(jnp.float32).reshape(1, D1)
    w2p = jnp.pad(w2.astype(jnp.float32), ((0, 0), (0, DP - D2)))
    b2p = jnp.pad(b2.astype(jnp.float32).reshape(1, D2), ((0, 0), (0, DP - D2)))

    weight_bytes = (H * D1 + D1 + D1 * DP + DP) * 4
    cost = pl.CostEstimate(
        flops=2 * B * S * H + 2 * B * (H * D1 + D1 * DP),
        transcendentals=0,
        bytes_accessed=B * S * H * h_itemsize + B * S * 4 + weight_bytes + B * DP * 4,
    )

    kernel = functools.partial(e5_cls_kernel, compute_dtype=compute_dtype)

    out = pl.pallas_call(
        kernel,
        out_shape=jax.ShapeDtypeStruct((B, DP), jnp.float32),
        grid_spec=pltpu.PrefetchScalarGridSpec(
            num_scalar_prefetch=0,
            grid=(pl.cdiv(B, block_b),),
            in_specs=[
                pl.BlockSpec((block_b, S, H), lambda i: (i, 0, 0)),
                pl.BlockSpec((block_b, 1, S), lambda i: (i, 0, 0)),
                # Weights/biases: constant index_map -> VMEM-resident across tiles.
                # TODO(synk): pipeline_mode=pl.Buffered(1) here would reclaim ~1 MiB
                # of double-buffer VMEM on v7x if needed at larger batch tiles.
                pl.BlockSpec((H, D1), lambda i: (0, 0)),
                pl.BlockSpec((1, D1), lambda i: (0, 0)),
                pl.BlockSpec((D1, DP), lambda i: (0, 0)),
                pl.BlockSpec((1, DP), lambda i: (0, 0)),
            ],
            out_specs=pl.BlockSpec((block_b, DP), lambda i: (i, 0)),
        ),
        compiler_params=pltpu.CompilerParams(
            dimension_semantics=("parallel",),      # megacore sharding on v7x
            vmem_limit_bytes=vmem_limit_bytes,
        ),
        cost_estimate=cost,
    )(last_hidden_state, mask3, w1f, b1_2d, w2p, b2p)

    return out[:B, :D2]


def reference_forward(last_hidden_state, attention_mask, w1, b1, w2, b2):
    mask = attention_mask.astype(jnp.float32)
    masked = last_hidden_state * mask[..., None]
    emb = masked.sum(axis=1) / mask.sum(axis=1, keepdims=True)
    hp = jax.lax.Precision.HIGHEST
    z1 = jnp.maximum(jnp.dot(emb, w1, precision=hp) + b1, 0.0)
    return jnp.dot(z1, w2, precision=hp) + b2


if __name__ == "__main__":
    B, S, H = 2, 8, 768      # hidden must be 768 to match the MLP's in_features
    D1, D2 = 256, 40

    key = jax.random.PRNGKey(0)
    k_h, k_w1, k_b1, k_w2, k_b2 = jax.random.split(key, 5)

    # synthetic "t5_model(**x).last_hidden_state"
    last_hidden_state = jax.random.normal(k_h, (B, S, H), dtype=jnp.float32)
    # attention mask with ragged lengths (8 and 5)
    lengths = jnp.array([8, 5], dtype=jnp.int32)
    attention_mask = (jnp.arange(S)[None, :] < lengths[:, None]).astype(jnp.int32)

    # deterministic MLP parameter init
    w1 = jax.random.normal(k_w1, (H, D1), dtype=jnp.float32) * 0.02
    b1 = jax.random.normal(k_b1, (D1,), dtype=jnp.float32) * 0.02
    w2 = jax.random.normal(k_w2, (D1, D2), dtype=jnp.float32) * 0.02
    b2 = jax.random.normal(k_b2, (D2,), dtype=jnp.float32) * 0.02

    out = e5_cls_forward(last_hidden_state, attention_mask, w1, b1, w2, b2)
    out = jax.block_until_ready(out)

    # Reference computed from the same bf16-rounded hidden states the kernel's
    # in-kernel cast produces for the pooling matmul.
    h_bf16 = last_hidden_state.astype(jnp.bfloat16).astype(jnp.float32)
    ref = reference_forward(h_bf16, attention_mask, w1, b1, w2, b2)

    assert out.shape == (B, D2)
    assert jnp.allclose(out, ref, atol=1e-2, rtol=1e-2), float(jnp.max(jnp.abs(out - ref)))

    print("KERNEL_OK")
</pallas_src>

<mosaic_0001>
module attributes {stable_mosaic.version = 11 : i64} {
  func.func @e5_cls_kernel(%arg0: i32, %arg1: memref<2x8x768xf32, #tpu.memory_space<vmem>>, %arg2: memref<2x1x8xf32, #tpu.memory_space<vmem>>, %arg3: memref<768x256xf32, #tpu.memory_space<vmem>>, %arg4: memref<1x256xf32, #tpu.memory_space<vmem>>, %arg5: memref<256x128xf32, #tpu.memory_space<vmem>>, %arg6: memref<1x128xf32, #tpu.memory_space<vmem>>, %arg7: memref<2x128xf32, #tpu.memory_space<vmem>>) attributes {dimension_semantics = [#tpu.dimension_semantics<parallel>], iteration_bounds = array<i64: 1>, scalar_prefetch = 0 : i64, scratch_operands = 0 : i64, tpu.core_type = #tpu.core_type<tc>, window_params = [{transform_indices = @transform_0, window_bounds = array<i64: 2, 8, 768>}, {transform_indices = @transform_1, window_bounds = array<i64: 2, 1, 8>}, {pipeline_mode = #tpu.pipeline_mode<synchronous>, transform_indices = @transform_2, window_bounds = array<i64: 768, 256>}, {pipeline_mode = #tpu.pipeline_mode<synchronous>, transform_indices = @transform_3, window_bounds = array<i64: 1, 256>}, {pipeline_mode = #tpu.pipeline_mode<synchronous>, transform_indices = @transform_4, window_bounds = array<i64: 256, 128>}, {pipeline_mode = #tpu.pipeline_mode<synchronous>, transform_indices = @transform_5, window_bounds = array<i64: 1, 128>}, {transform_indices = @transform_6, window_bounds = array<i64: 2, 128>}]} {
    %c0 = arith.constant 0 : index
    %c0_0 = arith.constant 0 : index
    %c0_1 = arith.constant 0 : index
    %0 = vector.load %arg2[%c0, %c0_0, %c0_1] : memref<2x1x8xf32, #tpu.memory_space<vmem>>, vector<2x1x8xf32>
    %1 = arith.truncf %0 : vector<2x1x8xf32> to vector<2x1x8xbf16>
    %c0_2 = arith.constant 0 : index
    %c0_3 = arith.constant 0 : index
    %c0_4 = arith.constant 0 : index
    %2 = vector.load %arg1[%c0_2, %c0_3, %c0_4] : memref<2x8x768xf32, #tpu.memory_space<vmem>>, vector<2x8x768xf32>
    %3 = arith.truncf %2 : vector<2x8x768xf32> to vector<2x8x768xbf16>
    "tpu.trace_start"() <{level = 10 : i32, message = "tus,tsh->tuh"}> : () -> ()
    %cst = arith.constant dense<0.000000e+00> : vector<2x1x768xf32>
    %4 = tpu.matmul %1, %3, %cst {dimension_numbers = #tpu.dot_dimension_numbers<[2], [1], [1], [2], [0, 0, 0, 1, 1, 2], [0], [0]>} : vector<2x1x8xbf16>, vector<2x8x768xbf16>, vector<2x1x768xf32> -> vector<2x1x768xf32>
    "tpu.trace_stop"() : () -> ()
    %5 = vector.shape_cast %4 : vector<2x1x768xf32> to vector<2x768xf32>
    %cst_5 = arith.constant dense<0.000000e+00> : vector<2x1xf32>
    %6 = vector.multi_reduction <add>, %0, %cst_5 [2] : vector<2x1x8xf32> to vector<2x1xf32>
    %cst_6 = arith.constant 1.000000e+00 : f32
    %7 = vector.broadcast %cst_6 : f32 to vector<2x1xf32>
    %8 = arith.maximumf %6, %7 : vector<2x1xf32>
    %9 = vector.broadcast %8 : vector<2x1xf32> to vector<2x768xf32>
    %10 = arith.divf %5, %9 : vector<2x768xf32>
    %c0_7 = arith.constant 0 : index
    %c0_8 = arith.constant 0 : index
    %11 = vector.load %arg3[%c0_7, %c0_8] : memref<768x256xf32, #tpu.memory_space<vmem>>, vector<768x256xf32>
    %cst_9 = arith.constant dense<0.000000e+00> : vector<2x256xf32>
    %12 = tpu.matmul %10, %11, %cst_9 {dimension_numbers = #tpu.dot_dimension_numbers<[1], [0], [0], [1], [0, 0, 1, 1], [], []>} : vector<2x768xf32>, vector<768x256xf32>, vector<2x256xf32> -> vector<2x256xf32>
    %c0_10 = arith.constant 0 : index
    %c0_11 = arith.constant 0 : index
    %13 = vector.load %arg4[%c0_10, %c0_11] : memref<1x256xf32, #tpu.memory_space<vmem>>, vector<1x256xf32>
    %14 = vector.broadcast %13 : vector<1x256xf32> to vector<2x256xf32>
    %15 = arith.addf %12, %14 : vector<2x256xf32>
    %cst_12 = arith.constant 0.000000e+00 : f32
    %16 = vector.broadcast %cst_12 : f32 to vector<2x256xf32>
    %17 = arith.maximumf %15, %16 : vector<2x256xf32>
    %c0_13 = arith.constant 0 : index
    %c0_14 = arith.constant 0 : index
    %18 = vector.load %arg5[%c0_13, %c0_14] : memref<256x128xf32, #tpu.memory_space<vmem>>, vector<256x128xf32>
    %cst_15 = arith.constant dense<0.000000e+00> : vector<2x128xf32>
    %19 = tpu.matmul %17, %18, %cst_15 {dimension_numbers = #tpu.dot_dimension_numbers<[1], [0], [0], [1], [0, 0, 1, 1], [], []>} : vector<2x256xf32>, vector<256x128xf32>, vector<2x128xf32> -> vector<2x128xf32>
    %c0_16 = arith.constant 0 : index
    %c0_17 = arith.constant 0 : index
    %20 = vector.load %arg6[%c0_16, %c0_17] : memref<1x128xf32, #tpu.memory_space<vmem>>, vector<1x128xf32>
    %21 = vector.broadcast %20 : vector<1x128xf32> to vector<2x128xf32>
    %22 = arith.addf %19, %21 : vector<2x128xf32>
    %c0_18 = arith.constant 0 : index
    %c0_19 = arith.constant 0 : index
    %23 = vector.load %arg7[%c0_18, %c0_19] : memref<2x128xf32, #tpu.memory_space<vmem>>, vector<2x128xf32>
    tpu.vector_store %arg7[%c0_18, %c0_19], %22 {strides = array<i32>} : memref<2x128xf32, #tpu.memory_space<vmem>>, vector<2x128xf32>,
    return
  }
  func.func @transform_0(%arg0: i32) -> (i32, i32, i32) {
    %c0_i32 = arith.constant 0 : i32
    %c0_i32_0 = arith.constant 0 : i32
    %c0_i32_1 = arith.constant 0 : i32
    return %arg0, %c0_i32, %c0_i32_0 : i32, i32, i32
  }
  func.func @transform_1(%arg0: i32) -> (i32, i32, i32) {
    %c0_i32 = arith.constant 0 : i32
    %c0_i32_0 = arith.constant 0 : i32
    %c0_i32_1 = arith.constant 0 : i32
    return %arg0, %c0_i32, %c0_i32_0 : i32, i32, i32
  }
  func.func @transform_2(%arg0: i32) -> (i32, i32) {
    %c0_i32 = arith.constant 0 : i32
    %c0_i32_0 = arith.constant 0 : i32
    %c0_i32_1 = arith.constant 0 : i32
    return %c0_i32, %c0_i32_0 : i32, i32
  }
  func.func @transform_3(%arg0: i32) -> (i32, i32) {
    %c0_i32 = arith.constant 0 : i32
    %c0_i32_0 = arith.constant 0 : i32
    %c0_i32_1 = arith.constant 0 : i32
    return %c0_i32, %c0_i32_0 : i32, i32
  }
  func.func @transform_4(%arg0: i32) -> (i32, i32) {
    %c0_i32 = arith.constant 0 : i32
    %c0_i32_0 = arith.constant 0 : i32
    %c0_i32_1 = arith.constant 0 : i32
    return %c0_i32, %c0_i32_0 : i32, i32
  }
  func.func @transform_5(%arg0: i32) -> (i32, i32) {
    %c0_i32 = arith.constant 0 : i32
    %c0_i32_0 = arith.constant 0 : i32
    %c0_i32_1 = arith.constant 0 : i32
    return %c0_i32, %c0_i32_0 : i32, i32
  }
  func.func @transform_6(%arg0: i32) -> (i32, i32) {
    %c0_i32 = arith.constant 0 : i32
    %c0_i32_0 = arith.constant 0 : i32
    return %arg0, %c0_i32 : i32, i32
  }
}

</mosaic_0001>

<llo_original>
// kernel: tpu_custom_call.1
$region0: #{tpu_custom_call.1}
  #allocation0 [shape = 'u32[]', space=smem, size = 0x4, offset = 0x4, fixed_abs, tag = 'smem constant byte address 0x4 - core index']
  #allocation1 [shape = 'u32[144,128]{1,0:T(1,128)}', space=vmem, size = 0x12000, scoped, tag = 'internal scratch']
  %s0 = inlined_call_operand.hbm [shape: f32[2,8,768], index: 0, kind: input, shape index: {}]
  %s1 = inlined_call_operand.vmem [shape: f32[2,1,8], index: 1, kind: input, shape index: {}]
  %s2 = inlined_call_operand.hbm [shape: f32[768,256], index: 2, kind: input, shape index: {}]
  %s3 = inlined_call_operand.vmem [shape: f32[1,256], index: 3, kind: input, shape index: {}]
  %s4 = inlined_call_operand.hbm [shape: f32[256,128], index: 4, kind: input, shape index: {}]
  %s5 = inlined_call_operand.vmem [shape: f32[1,128], index: 5, kind: input, shape index: {}]
  %s6 = inlined_call_operand.hbm [shape: f32[2,128], index: 6, kind: output, shape index: {}]
  %s7 = sld [smem:[#allocation0]]
  $region46: #{tpu_custom_call.1} parent=0
    _
  %s9 = ssub.s32 1, %s7
  %s10 = scalar_select 0, %s9, %s7
  $region1: #{tpu_custom_call.1} parent=0
    #allocation2 [shape = 'u8[49152]{0}', space=vmem, size = 0xc000, scoped, tag = 'input window, operand 0, single buffered']
    #allocation3 [shape = 's32[1]{0}', space=sflag, size = 0x4, scoped, tag = 'scoped memory for tpu_custom_call.1']
    #allocation4 [shape = 's32[1]{0}', space=sflag, size = 0x4, scoped, tag = 'scoped memory for tpu_custom_call.1']
    #allocation5 [shape = 'u8[786432]{0}', space=vmem, size = 0xc0000, scoped, tag = 'input window, operand 2, single buffered']
    #allocation6 [shape = 's32[1]{0}', space=sflag, size = 0x4, scoped, tag = 'scoped memory for tpu_custom_call.1']
    #allocation7 [shape = 'u8[131072]{0}', space=vmem, size = 0x20000, scoped, tag = 'input window, operand 4, single buffered']
    #allocation8 [shape = 'u8[1024]{0}', space=vmem, size = 0x400, scoped, tag = 'output window, operand 0, single buffered']
    %11 = vsyncpa [#allocation3], 0
    %12 = vsyncpa [#allocation6], 0
    %13 = vsyncpa [#allocation4], 0
    // Predicated region
    $region2: #{tpu_custom_call.1} parent=1 // pred_check
      _
    $region3: #{tpu_custom_call.1} parent=1 // pred_check_branch
      %15 = sbr.rel (0) target = $region5
    $region4: #{tpu_custom_call.1} parent=1 // pred_region
      %s17 = ssub.s32 1536, 1536
      %18 = vsyncadd [#allocation3], %s17
      %s19 = sshll.u32 [#allocation2], 4
      %s20 = int_to_ptr.vmem [resolvable:$true] %s19
      %25 = dma.hbm_to_vmem [thread:$0]  %s0, 1536, %s20, [#allocation3], 768, 768, 48
    $region5: #{tpu_custom_call.1} parent=1 // pred_fallthru
      _
    // Predicated region
    $region6: #{tpu_custom_call.1} parent=1 // pred_check
      _
    $region7: #{tpu_custom_call.1} parent=1 // pred_check_branch
      %27 = sbr.rel (0) target = $region9
    $region8: #{tpu_custom_call.1} parent=1 // pred_region
      _
    $region9: #{tpu_custom_call.1} parent=1 // pred_fallthru
      _
    // Predicated region
    $region10: #{tpu_custom_call.1} parent=1 // pred_check
      _
    $region11: #{tpu_custom_call.1} parent=1 // pred_check_branch
      %29 = sbr.rel (0) target = $region13
    $region12: #{tpu_custom_call.1} parent=1 // pred_region
      %s31 = ssub.s32 24576, 24576
      %32 = vsyncadd [#allocation6], %s31
      %s33 = sshll.u32 [#allocation5], 4
      %s34 = int_to_ptr.vmem [resolvable:$true] %s33
      %39 = dma.hbm_to_vmem [thread:$0]  %s2, 24576, %s34, [#allocation6], 256, 256, 16
    $region13: #{tpu_custom_call.1} parent=1 // pred_fallthru
      _
    // Predicated region
    $region14: #{tpu_custom_call.1} parent=1 // pred_check
      _
    $region15: #{tpu_custom_call.1} parent=1 // pred_check_branch
      %41 = sbr.rel (0) target = $region17
    $region16: #{tpu_custom_call.1} parent=1 // pred_region
      _
    $region17: #{tpu_custom_call.1} parent=1 // pred_fallthru
      _
    // Predicated region
    $region18: #{tpu_custom_call.1} parent=1 // pred_check
      _
    $region19: #{tpu_custom_call.1} parent=1 // pred_check_branch
      %43 = sbr.rel (0) target = $region21
    $region20: #{tpu_custom_call.1} parent=1 // pred_region
      %s45 = ssub.s32 4096, 4096
      %46 = vsyncadd [#allocation6], %s45
      %s47 = sshll.u32 [#allocation7], 4
      %s48 = int_to_ptr.vmem [resolvable:$true] %s47
      %53 = dma.hbm_to_vmem [thread:$0]  %s4, 4096, %s48, [#allocation6], 128, 128, 8
    $region21: #{tpu_custom_call.1} parent=1 // pred_fallthru
      _
    // Predicated region
    $region22: #{tpu_custom_call.1} parent=1 // pred_check
      _
    $region23: #{tpu_custom_call.1} parent=1 // pred_check_branch
      %55 = sbr.rel (0) target = $region25
    $region24: #{tpu_custom_call.1} parent=1 // pred_region
      _
    $region25: #{tpu_custom_call.1} parent=1 // pred_fallthru
      _
    // Predicated region
    $region26: #{tpu_custom_call.1} parent=1 // pred_check
      _
    $region27: #{tpu_custom_call.1} parent=1 // pred_check_branch
      %57 = sbr.rel (0) target = $region29
    $region28: #{tpu_custom_call.1} parent=1 // pred_region
      %58 = dma.done [#allocation3], 1536
    $region29: #{tpu_custom_call.1} parent=1 // pred_fallthru
      _
    // Predicated region
    $region30: #{tpu_custom_call.1} parent=1 // pred_check
      _
    $region31: #{tpu_custom_call.1} parent=1 // pred_check_branch
      %60 = sbr.rel (0) target = $region33
    $region32: #{tpu_custom_call.1} parent=1 // pred_region
      %61 = dma.done [#allocation6], 24576
    $region33: #{tpu_custom_call.1} parent=1 // pred_fallthru
      _
    // Predicated region
    $region34: #{tpu_custom_call.1} parent=1 // pred_check
      _
    $region35: #{tpu_custom_call.1} parent=1 // pred_check_branch
      %63 = sbr.rel (0) target = $region37
    $region36: #{tpu_custom_call.1} parent=1 // pred_region
      %64 = dma.done [#allocation6], 4096
    $region37: #{tpu_custom_call.1} parent=1 // pred_fallthru
      _
    %v66 = vld [vmem:[%s1] sm:$0x1]
    %v67 = vld [vmem:[%s1 + $0x1] sm:$0x1]
    %v68 = vpack.c.bf16 %v66, %v66
    %v69 = vpack.c.bf16 %v67, %v67
    %v70 = vld [vmem:[#allocation2] sm:$0xff]
    %v71 = vld [vmem:[#allocation2 + $0x8] sm:$0xff]
    %v72 = vld [vmem:[#allocation2 + $0x10] sm:$0xff]
    %v73 = vld [vmem:[#allocation2 + $0x18] sm:$0xff]
    %v74 = vld [vmem:[#allocation2 + $0x20] sm:$0xff]
    %v75 = vld [vmem:[#allocation2 + $0x28] sm:$0xff]
    %v76 = vld [vmem:[#allocation2 + $0x30] sm:$0xff]
    %v77 = vld [vmem:[#allocation2 + $0x38] sm:$0xff]
    %v78 = vld [vmem:[#allocation2 + $0x40] sm:$0xff]
    %v79 = vld [vmem:[#allocation2 + $0x48] sm:$0xff]
    %v80 = vld [vmem:[#allocation2 + $0x50] sm:$0xff]
    %v81 = vld [vmem:[#allocation2 + $0x58] sm:$0xff]
    %v82 = vpack.c.bf16 %v70, %v70
    %v83 = vpack.c.bf16 %v71, %v71
    %v84 = vpack.c.bf16 %v72, %v72
    %v85 = vpack.c.bf16 %v73, %v73
    %v86 = vpack.c.bf16 %v74, %v74
    %v87 = vpack.c.bf16 %v75, %v75
    %v88 = vpack.c.bf16 %v76, %v76
    %v89 = vpack.c.bf16 %v77, %v77
    %v90 = vpack.c.bf16 %v78, %v78
    %v91 = vpack.c.bf16 %v79, %v79
    %v92 = vpack.c.bf16 %v80, %v80
    %v93 = vpack.c.bf16 %v81, %v81
    %vm94 = vcmask 64512
    %v96 = vsel %vm94, %v68, 0
    %vm98 = vcmask 1043456
    %v100 = vsel %vm98, %v82, 0
    %v103 = vsel %vm98, %v83, 0
    %v106 = vsel %vm98, %v84, 0
    %v109 = vsel %vm98, %v85, 0
    %v112 = vsel %vm98, %v86, 0
    %v115 = vsel %vm98, %v87, 0
    %117 = vmatprep.subr.bf16.mxu0 %v103
    %118 = vmatpush1.bf16.msra.mxu0 %v100
    %119 = vmatprep.subr.bf16.mxu0 0
    %120 = vmatpush1.bf16.msra.mxu0 0
    %121 = vmatprep.subr.bf16.mxu0 0
    %122 = vmatpush1.bf16.msra.mxu0 0
    %123 = vmatprep.subr.bf16.mxu0 0
    %124 = vmatpush1.bf16.msra.mxu0 0
    %125 = vmatprep.subr.bf16.mxu0 0
    %126 = vmatpush1.bf16.msra.mxu0 0
    %127 = vmatprep.subr.bf16.mxu0 0
    %128 = vmatpush1.bf16.msra.mxu0 0
    %129 = vmatprep.subr.bf16.mxu0 0
    %130 = vmatpush1.bf16.msra.mxu0 0
    %131 = vmatprep.subr.bf16.mxu0 0
    %132 = vmatpush1.bf16.msra.mxu0 0
    %133 = vmatprep.subr.bf16.mxu0 0
    %134 = vmatpush1.bf16.msra.mxu0 0
    %135 = vmatprep.subr.bf16.mxu0 0
    %136 = vmatpush1.bf16.msra.mxu0 0
    %137 = vmatprep.subr.bf16.mxu0 0
    %138 = vmatpush1.bf16.msra.mxu0 0
    %139 = vmatprep.subr.bf16.mxu0 0
    %140 = vmatpush1.bf16.msra.mxu0 0
    %141 = vmatprep.subr.bf16.mxu0 0
    %142 = vmatpush1.bf16.msra.mxu0 0
    %143 = vmatprep.subr.bf16.mxu0 0
    %144 = vmatpush1.bf16.msra.mxu0 0
    %145 = vmatprep.subr.bf16.mxu0 0
    %146 = vmatpush1.bf16.msra.mxu0 0
    %147 = vmatprep.subr.bf16.mxu0 0
    %148 = vmatpush1.bf16.msra.mxu0 0
    %149 = vmatprep.mubr.bf16.mxu0 0
    %150 = vmatmul.mubr.bf16.gmra.mrb[0].mxu0 %v96
    %v151 = vpop.f32.mrb[0].mxu0
    %v152 = vadd.f32 0.0, %v151
    %v153 = vpop.f32.mrb[0].mxu0
    %v154 = vadd.f32 0.0, %v153
    %v155 = vpop.f32.mrb[0].mxu0
    %v156 = vpop.f32.mrb[0].mxu0
    %157 = vdwg.mxu0
    %158 = vmatprep.subr.bf16.mxu0 %v109
    %159 = vmatpush1.bf16.msra.mxu0 %v106
    %160 = vmatprep.subr.bf16.mxu0 0
    %161 = vmatpush1.bf16.msra.mxu0 0
    %162 = vmatprep.subr.bf16.mxu0 0
    %163 = vmatpush1.bf16.msra.mxu0 0
    %164 = vmatprep.subr.bf16.mxu0 0
    %165 = vmatpush1.bf16.msra.mxu0 0
    %166 = vmatprep.subr.bf16.mxu0 0
    %167 = vmatpush1.bf16.msra.mxu0 0
    %168 = vmatprep.subr.bf16.mxu0 0
    %169 = vmatpush1.bf16.msra.mxu0 0
    %170 = vmatprep.subr.bf16.mxu0 0
    %171 = vmatpush1.bf16.msra.mxu0 0
    %172 = vmatprep.subr.bf16.mxu0 0
    %173 = vmatpush1.bf16.msra.mxu0 0
    %174 = vmatprep.subr.bf16.mxu0 0
    %175 = vmatpush1.bf16.msra.mxu0 0
    %176 = vmatprep.subr.bf16.mxu0 0
    %177 = vmatpush1.bf16.msra.mxu0 0
    %178 = vmatprep.subr.bf16.mxu0 0
    %179 = vmatpush1.bf16.msra.mxu0 0
    %180 = vmatprep.subr.bf16.mxu0 0
    %181 = vmatpush1.bf16.msra.mxu0 0
    %182 = vmatprep.subr.bf16.mxu0 0
    %183 = vmatpush1.bf16.msra.mxu0 0
    %184 = vmatprep.subr.bf16.mxu0 0
    %185 = vmatpush1.bf16.msra.mxu0 0
    %186 = vmatprep.subr.bf16.mxu0 0
    %187 = vmatpush1.bf16.msra.mxu0 0
    %188 = vmatprep.subr.bf16.mxu0 0
    %189 = vmatpush1.bf16.msra.mxu0 0
    %190 = vmatprep.mubr.bf16.mxu0 0
    %191 = vmatmul.mubr.bf16.gmra.mrb[0].mxu0 %v96
    %v192 = vpop.f32.mrb[0].mxu0
    %v193 = vadd.f32 0.0, %v192
    %v194 = vpop.f32.mrb[0].mxu0
    %v195 = vadd.f32 0.0, %v194
    %v196 = vpop.f32.mrb[0].mxu0
    %v197 = vpop.f32.mrb[0].mxu0
    %198 = vdwg.mxu0
    %199 = vmatprep.subr.bf16.mxu0 %v115
    %200 = vmatpush1.bf16.msra.mxu0 %v112
    %201 = vmatprep.subr.bf16.mxu0 0
    %202 = vmatpush1.bf16.msra.mxu0 0
    %203 = vmatprep.subr.bf16.mxu0 0
    %204 = vmatpush1.bf16.msra.mxu0 0
    %205 = vmatprep.subr.bf16.mxu0 0
    %206 = vmatpush1.bf16.msra.mxu0 0
    %207 = vmatprep.subr.bf16.mxu0 0
    %208 = vmatpush1.bf16.msra.mxu0 0
    %209 = vmatprep.subr.bf16.mxu0 0
    %210 = vmatpush1.bf16.msra.mxu0 0
    %211 = vmatprep.subr.bf16.mxu0 0
    %212 = vmatpush1.bf16.msra.mxu0 0
    %213 = vmatprep.subr.bf16.mxu0 0
    %214 = vmatpush1.bf16.msra.mxu0 0
    %215 = vmatprep.subr.bf16.mxu0 0
    %216 = vmatpush1.bf16.msra.mxu0 0
    %217 = vmatprep.subr.bf16.mxu0 0
    %218 = vmatpush1.bf16.msra.mxu0 0
    %219 = vmatprep.subr.bf16.mxu0 0
    %220 = vmatpush1.bf16.msra.mxu0 0
    %221 = vmatprep.subr.bf16.mxu0 0
    %222 = vmatpush1.bf16.msra.mxu0 0
    %223 = vmatprep.subr.bf16.mxu0 0
    %224 = vmatpush1.bf16.msra.mxu0 0
    %225 = vmatprep.subr.bf16.mxu0 0
    %226 = vmatpush1.bf16.msra.mxu0 0
    %227 = vmatprep.subr.bf16.mxu0 0
    %228 = vmatpush1.bf16.msra.mxu0 0
    %229 = vmatprep.subr.bf16.mxu0 0
    %230 = vmatpush1.bf16.msra.mxu0 0
    %231 = vmatprep.mubr.bf16.mxu0 0
    %232 = vmatmul.mubr.bf16.gmra.mrb[0].mxu0 %v96
    %v233 = vpop.f32.mrb[0].mxu0
    %v234 = vadd.f32 0.0, %v233
    %v235 = vpop.f32.mrb[0].mxu0
    %v236 = vadd.f32 0.0, %v235
    %v237 = vpop.f32.mrb[0].mxu0
    %v238 = vpop.f32.mrb[0].mxu0
    %239 = vdwg.mxu0
    %v241 = vsel %vm94, %v69, 0
    %v244 = vsel %vm98, %v88, 0
    %v247 = vsel %vm98, %v89, 0
    %v250 = vsel %vm98, %v90, 0
    %v253 = vsel %vm98, %v91, 0
    %v256 = vsel %vm98, %v92, 0
    %v259 = vsel %vm98, %v93, 0
    %261 = vmatprep.subr.bf16.mxu0 %v247
    %262 = vmatpush1.bf16.msra.mxu0 %v244
    %263 = vmatprep.subr.bf16.mxu0 0
    %264 = vmatpush1.bf16.msra.mxu0 0
    %265 = vmatprep.subr.bf16.mxu0 0
    %266 = vmatpush1.bf16.msra.mxu0 0
    %267 = vmatprep.subr.bf16.mxu0 0
    %268 = vmatpush1.bf16.msra.mxu0 0
    %269 = vmatprep.subr.bf16.mxu0 0
    %270 = vmatpush1.bf16.msra.mxu0 0
    %271 = vmatprep.subr.bf16.mxu0 0
    %272 = vmatpush1.bf16.msra.mxu0 0
    %273 = vmatprep.subr.bf16.mxu0 0
    %274 = vmatpush1.bf16.msra.mxu0 0
    %275 = vmatprep.subr.bf16.mxu0 0
    %276 = vmatpush1.bf16.msra.mxu0 0
    %277 = vmatprep.subr.bf16.mxu0 0
    %278 = vmatpush1.bf16.msra.mxu0 0
    %279 = vmatprep.subr.bf16.mxu0 0
    %280 = vmatpush1.bf16.msra.mxu0 0
    %281 = vmatprep.subr.bf16.mxu0 0
    %282 = vmatpush1.bf16.msra.mxu0 0
    %283 = vmatprep.subr.bf16.mxu0 0
    %284 = vmatpush1.bf16.msra.mxu0 0
    %285 = vmatprep.subr.bf16.mxu0 0
    %286 = vmatpush1.bf16.msra.mxu0 0
    %287 = vmatprep.subr.bf16.mxu0 0
    %288 = vmatpush1.bf16.msra.mxu0 0
    %289 = vmatprep.subr.bf16.mxu0 0
    %290 = vmatpush1.bf16.msra.mxu0 0
    %291 = vmatprep.subr.bf16.mxu0 0
    %292 = vmatpush1.bf16.msra.mxu0 0
    %293 = vmatprep.mubr.bf16.mxu0 0
    %294 = vmatmul.mubr.bf16.gmra.mrb[0].mxu0 %v241
    %v295 = vpop.f32.mrb[0].mxu0
    %v296 = vadd.f32 0.0, %v295
    %v297 = vpop.f32.mrb[0].mxu0
    %v298 = vadd.f32 0.0, %v297
    %v299 = vpop.f32.mrb[0].mxu0
    %v300 = vpop.f32.mrb[0].mxu0
    %301 = vdwg.mxu0
    %302 = vmatprep.subr.bf16.mxu0 %v253
    %303 = vmatpush1.bf16.msra.mxu0 %v250
    %304 = vmatprep.subr.bf16.mxu0 0
    %305 = vmatpush1.bf16.msra.mxu0 0
    %306 = vmatprep.subr.bf16.mxu0 0
    %307 = vmatpush1.bf16.msra.mxu0 0
    %308 = vmatprep.subr.bf16.mxu0 0
    %309 = vmatpush1.bf16.msra.mxu0 0
    %310 = vmatprep.subr.bf16.mxu0 0
    %311 = vmatpush1.bf16.msra.mxu0 0
    %312 = vmatprep.subr.bf16.mxu0 0
    %313 = vmatpush1.bf16.msra.mxu0 0
    %314 = vmatprep.subr.bf16.mxu0 0
    %315 = vmatpush1.bf16.msra.mxu0 0
    %316 = vmatprep.subr.bf16.mxu0 0
    %317 = vmatpush1.bf16.msra.mxu0 0
    %318 = vmatprep.subr.bf16.mxu0 0
    %319 = vmatpush1.bf16.msra.mxu0 0
    %320 = vmatprep.subr.bf16.mxu0 0
    %321 = vmatpush1.bf16.msra.mxu0 0
    %322 = vmatprep.subr.bf16.mxu0 0
    %323 = vmatpush1.bf16.msra.mxu0 0
    %324 = vmatprep.subr.bf16.mxu0 0
    %325 = vmatpush1.bf16.msra.mxu0 0
    %326 = vmatprep.subr.bf16.mxu0 0
    %327 = vmatpush1.bf16.msra.mxu0 0
    %328 = vmatprep.subr.bf16.mxu0 0
    %329 = vmatpush1.bf16.msra.mxu0 0
    %330 = vmatprep.subr.bf16.mxu0 0
    %331 = vmatpush1.bf16.msra.mxu0 0
    %332 = vmatprep.subr.bf16.mxu0 0
    %333 = vmatpush1.bf16.msra.mxu0 0
    %334 = vmatprep.mubr.bf16.mxu0 0
    %335 = vmatmul.mubr.bf16.gmra.mrb[0].mxu0 %v241
    %v336 = vpop.f32.mrb[0].mxu0
    %v337 = vadd.f32 0.0, %v336
    %v338 = vpop.f32.mrb[0].mxu0
    %v339 = vadd.f32 0.0, %v338
    %v340 = vpop.f32.mrb[0].mxu0
    %v341 = vpop.f32.mrb[0].mxu0
    %342 = vdwg.mxu0
    %343 = vmatprep.subr.bf16.mxu0 %v259
    %344 = vmatpush1.bf16.msra.mxu0 %v256
    %345 = vmatprep.subr.bf16.mxu0 0
    %346 = vmatpush1.bf16.msra.mxu0 0
    %347 = vmatprep.subr.bf16.mxu0 0
    %348 = vmatpush1.bf16.msra.mxu0 0
    %349 = vmatprep.subr.bf16.mxu0 0
    %350 = vmatpush1.bf16.msra.mxu0 0
    %351 = vmatprep.subr.bf16.mxu0 0
    %352 = vmatpush1.bf16.msra.mxu0 0
    %353 = vmatprep.subr.bf16.mxu0 0
    %354 = vmatpush1.bf16.msra.mxu0 0
    %355 = vmatprep.subr.bf16.mxu0 0
    %356 = vmatpush1.bf16.msra.mxu0 0
    %357 = vmatprep.subr.bf16.mxu0 0
    %358 = vmatpush1.bf16.msra.mxu0 0
    %359 = vmatprep.subr.bf16.mxu0 0
    %360 = vmatpush1.bf16.msra.mxu0 0
    %361 = vmatprep.subr.bf16.mxu0 0
    %362 = vmatpush1.bf16.msra.mxu0 0
    %363 = vmatprep.subr.bf16.mxu0 0
    %364 = vmatpush1.bf16.msra.mxu0 0
    %365 = vmatprep.subr.bf16.mxu0 0
    %366 = vmatpush1.bf16.msra.mxu0 0
    %367 = vmatprep.subr.bf16.mxu0 0
    %368 = vmatpush1.bf16.msra.mxu0 0
    %369 = vmatprep.subr.bf16.mxu0 0
    %370 = vmatpush1.bf16.msra.mxu0 0
    %371 = vmatprep.subr.bf16.mxu0 0
    %372 = vmatpush1.bf16.msra.mxu0 0
    %373 = vmatprep.subr.bf16.mxu0 0
    %374 = vmatpush1.bf16.msra.mxu0 0
    %375 = vmatprep.mubr.bf16.mxu0 0
    %376 = vmatmul.mubr.bf16.gmra.mrb[0].mxu0 %v241
    %v377 = vpop.f32.mrb[0].mxu0
    %v378 = vadd.f32 0.0, %v377
    %v379 = vpop.f32.mrb[0].mxu0
    %v380 = vadd.f32 0.0, %v379
    %v381 = vpop.f32.mrb[0].mxu0
    %v382 = vpop.f32.mrb[0].mxu0
    %383 = vdwg.mxu0
    %vm384 = vcmask 57344
    %v385 = vsel %vm384, %v66, 0.0
    %386 = vadd.xlane.f32.xlu0 %v385
    %v387 = vpop.xlane.xlu0 %386
    %v388 = vsel %vm384, %v67, 0.0
    %389 = vadd.xlane.f32.xlu0 %v388
    %v390 = vpop.xlane.xlu0 %389
    %v391 = vmax.f32 %v387, 1.0
    %v392 = vmax.f32 %v390, 1.0
    %v393 = vlaneseq
    %v394 = vshrl.u32 %v393, 7
    %v395 = vsub.s32 0, %v394
    %v396 = vrot.slane %v391, %v395
    %v397 = vlaneseq
    %v398 = vshrl.u32 %v397, 7
    %v399 = vsub.s32 0, %v398
    %v400 = vrot.slane %v392, %v399
    %v401 = vrcp.pop %v396
    %v402 = vmul.f32 %v152, %v401
    %v403 = vmul.f32 %v154, %v401
    %v404 = vmul.f32 %v193, %v401
    %v405 = vmul.f32 %v195, %v401
    %v406 = vmul.f32 %v234, %v401
    %v407 = vmul.f32 %v236, %v401
    %v408 = vrcp.pop %v400
    %v409 = vmul.f32 %v296, %v408
    %v410 = vmul.f32 %v298, %v408
    %v411 = vmul.f32 %v337, %v408
    %v412 = vmul.f32 %v339, %v408
    %v413 = vmul.f32 %v378, %v408
    %v414 = vmul.f32 %v380, %v408
    %v415 = vld [vmem:[#allocation5] sm:$0xff]
    %v416 = vld [vmem:[#allocation5 + $0x8] sm:$0xff]
    %v417 = vld [vmem:[#allocation5 + $0x10] sm:$0xff]
    %v418 = vld [vmem:[#allocation5 + $0x18] sm:$0xff]
    %v419 = vld [vmem:[#allocation5 + $0x20] sm:$0xff]
    %v420 = vld [vmem:[#allocation5 + $0x28] sm:$0xff]
    %v421 = vld [vmem:[#allocation5 + $0x30] sm:$0xff]
    %v422 = vld [vmem:[#allocation5 + $0x38] sm:$0xff]
    %v423 = vld [vmem:[#allocation5 + $0x40] sm:$0xff]
    %v424 = vld [vmem:[#allocation5 + $0x48] sm:$0xff]
    %v425 = vld [vmem:[#allocation5 + $0x50] sm:$0xff]
    %v426 = vld [vmem:[#allocation5 + $0x58] sm:$0xff]
    %v427 = vld [vmem:[#allocation5 + $0x60] sm:$0xff]
    %v428 = vld [vmem:[#allocation5 + $0x68] sm:$0xff]
    %v429 = vld [vmem:[#allocation5 + $0x70] sm:$0xff]
    %v430 = vld [vmem:[#allocation5 + $0x78] sm:$0xff]
    %v431 = vld [vmem:[#allocation5 + $0x80] sm:$0xff]
    %v432 = vld [vmem:[#allocation5 + $0x88] sm:$0xff]
    %v433 = vld [vmem:[#allocation5 + $0x90] sm:$0xff]
    %v434 = vld [vmem:[#allocation5 + $0x98] sm:$0xff]
    %v435 = vld [vmem:[#allocation5 + $0xa0] sm:$0xff]
    %v436 = vld [vmem:[#allocation5 + $0xa8] sm:$0xff]
    %v437 = vld [vmem:[#allocation5 + $0xb0] sm:$0xff]
    %v438 = vld [vmem:[#allocation5 + $0xb8] sm:$0xff]
    %v439 = vld [vmem:[#allocation5 + $0xc0] sm:$0xff]
    %v440 = vld [vmem:[#allocation5 + $0xc8] sm:$0xff]
    %v441 = vld [vmem:[#allocation5 + $0xd0] sm:$0xff]
    %v442 = vld [vmem:[#allocation5 + $0xd8] sm:$0xff]
    %v443 = vld [vmem:[#allocation5 + $0xe0] sm:$0xff]
    %v444 = vld [vmem:[#allocation5 + $0xe8] sm:$0xff]
    %v445 = vld [vmem:[#allocation5 + $0xf0] sm:$0xff]
    %v446 = vld [vmem:[#allocation5 + $0xf8] sm:$0xff]
    %v447 = vld [vmem:[#allocation5 + $0x100] sm:$0xff]
    %v448 = vld [vmem:[#allocation5 + $0x108] sm:$0xff]
    %v449 = vld [vmem:[#allocation5 + $0x110] sm:$0xff]
    %v450 = vld [vmem:[#allocation5 + $0x118] sm:$0xff]
    %v451 = vld [vmem:[#allocation5 + $0x120] sm:$0xff]
    %v452 = vld [vmem:[#allocation5 + $0x128] sm:$0xff]
    %v453 = vld [vmem:[#allocation5 + $0x130] sm:$0xff]
    %v454 = vld [vmem:[#allocation5 + $0x138] sm:$0xff]
    %v455 = vld [vmem:[#allocation5 + $0x140] sm:$0xff]
    %v456 = vld [vmem:[#allocation5 + $0x148] sm:$0xff]
    %v457 = vld [vmem:[#allocation5 + $0x150] sm:$0xff]
    %v458 = vld [vmem:[#allocation5 + $0x158] sm:$0xff]
    %v459 = vld [vmem:[#allocation5 + $0x160] sm:$0xff]
    %v460 = vld [vmem:[#allocation5 + $0x168] sm:$0xff]
    %v461 = vld [vmem:[#allocation5 + $0x170] sm:$0xff]
    %v462 = vld [vmem:[#allocation5 + $0x178] sm:$0xff]
    %v463 = vld [vmem:[#allocation5 + $0x180] sm:$0xff]
    %v464 = vld [vmem:[#allocation5 + $0x188] sm:$0xff]
    %v465 = vld [vmem:[#allocation5 + $0x190] sm:$0xff]
    %v466 = vld [vmem:[#allocation5 + $0x198] sm:$0xff]
    %v467 = vld [vmem:[#allocation5 + $0x1a0] sm:$0xff]
    %v468 = vld [vmem:[#allocation5 + $0x1a8] sm:$0xff]
    %v469 = vld [vmem:[#allocation5 + $0x1b0] sm:$0xff]
    %v470 = vld [vmem:[#allocation5 + $0x1b8] sm:$0xff]
    %v471 = vld [vmem:[#allocation5 + $0x1c0] sm:$0xff]
    %v472 = vld [vmem:[#allocation5 + $0x1c8] sm:$0xff]
    %v473 = vld [vmem:[#allocation5 + $0x1d0] sm:$0xff]
    %v474 = vld [vmem:[#allocation5 + $0x1d8] sm:$0xff]
    %v475 = vld [vmem:[#allocation5 + $0x1e0] sm:$0xff]
    %v476 = vld [vmem:[#allocation5 + $0x1e8] sm:$0xff]
    %v477 = vld [vmem:[#allocation5 + $0x1f0] sm:$0xff]
    %v478 = vld [vmem:[#allocation5 + $0x1f8] sm:$0xff]
    %v479 = vld [vmem:[#allocation5 + $0x200] sm:$0xff]
    %v480 = vld [vmem:[#allocation5 + $0x208] sm:$0xff]
    %v481 = vld [vmem:[#allocation5 + $0x210] sm:$0xff]
    %v482 = vld [vmem:[#allocation5 + $0x218] sm:$0xff]
    %v483 = vld [vmem:[#allocation5 + $0x220] sm:$0xff]
    %v484 = vld [vmem:[#allocation5 + $0x228] sm:$0xff]
    %v485 = vld [vmem:[#allocation5 + $0x230] sm:$0xff]
    %v486 = vld [vmem:[#allocation5 + $0x238] sm:$0xff]
    %v487 = vld [vmem:[#allocation5 + $0x240] sm:$0xff]
    %v488 = vld [vmem:[#allocation5 + $0x248] sm:$0xff]
    %v489 = vld [vmem:[#allocation5 + $0x250] sm:$0xff]
    %v490 = vld [vmem:[#allocation5 + $0x258] sm:$0xff]
    %v491 = vld [vmem:[#allocation5 + $0x260] sm:$0xff]
    %v492 = vld [vmem:[#allocation5 + $0x268] sm:$0xff]
    %v493 = vld [vmem:[#allocation5 + $0x270] sm:$0xff]
    %v494 = vld [vmem:[#allocation5 + $0x278] sm:$0xff]
    %v495 = vld [vmem:[#allocation5 + $0x280] sm:$0xff]
    %v496 = vld [vmem:[#allocation5 + $0x288] sm:$0xff]
    %v497 = vld [vmem:[#allocation5 + $0x290] sm:$0xff]
    %v498 = vld [vmem:[#allocation5 + $0x298] sm:$0xff]
    %v499 = vld [vmem:[#allocation5 + $0x2a0] sm:$0xff]
    %v500 = vld [vmem:[#allocation5 + $0x2a8] sm:$0xff]
    %v501 = vld [vmem:[#allocation5 + $0x2b0] sm:$0xff]
    %v502 = vld [vmem:[#allocation5 + $0x2b8] sm:$0xff]
    %v503 = vld [vmem:[#allocation5 + $0x2c0] sm:$0xff]
    %v504 = vld [vmem:[#allocation5 + $0x2c8] sm:$0xff]
    %v505 = vld [vmem:[#allocation5 + $0x2d0] sm:$0xff]
    %v506 = vld [vmem:[#allocation5 + $0x2d8] sm:$0xff]
    %v507 = vld [vmem:[#allocation5 + $0x2e0] sm:$0xff]
    %v508 = vld [vmem:[#allocation5 + $0x2e8] sm:$0xff]
    %v509 = vld [vmem:[#allocation5 + $0x2f0] sm:$0xff]
    %v510 = vld [vmem:[#allocation5 + $0x2f8] sm:$0xff]
    %v511 = vld [vmem:[#allocation5 + $0x300] sm:$0xff]
    %v512 = vld [vmem:[#allocation5 + $0x308] sm:$0xff]
    %v513 = vld [vmem:[#allocation5 + $0x310] sm:$0xff]
    %v514 = vld [vmem:[#allocation5 + $0x318] sm:$0xff]
    %v515 = vld [vmem:[#allocation5 + $0x320] sm:$0xff]
    %v516 = vld [vmem:[#allocation5 + $0x328] sm:$0xff]
    %v517 = vld [vmem:[#allocation5 + $0x330] sm:$0xff]
    %v518 = vld [vmem:[#allocation5 + $0x338] sm:$0xff]
    %v519 = vld [vmem:[#allocation5 + $0x340] sm:$0xff]
    %v520 = vld [vmem:[#allocation5 + $0x348] sm:$0xff]
    %v521 = vld [vmem:[#allocation5 + $0x350] sm:$0xff]
    %v522 = vld [vmem:[#allocation5 + $0x358] sm:$0xff]
    %v523 = vld [vmem:[#allocation5 + $0x360] sm:$0xff]
    %v524 = vld [vmem:[#allocation5 + $0x368] sm:$0xff]
    %v525 = vld [vmem:[#allocation5 + $0x370] sm:$0xff]
    %v526 = vld [vmem:[#allocation5 + $0x378] sm:$0xff]
    %v527 = vld [vmem:[#allocation5 + $0x380] sm:$0xff]
    %v528 = vld [vmem:[#allocation5 + $0x388] sm:$0xff]
    %v529 = vld [vmem:[#allocation5 + $0x390] sm:$0xff]
    %v530 = vld [vmem:[#allocation5 + $0x398] sm:$0xff]
    %v531 = vld [vmem:[#allocation5 + $0x3a0] sm:$0xff]
    %v532 = vld [vmem:[#allocation5 + $0x3a8] sm:$0xff]
    %v533 = vld [vmem:[#allocation5 + $0x3b0] sm:$0xff]
    %v534 = vld [vmem:[#allocation5 + $0x3b8] sm:$0xff]
    %v535 = vld [vmem:[#allocation5 + $0x3c0] sm:$0xff]
    %v536 = vld [vmem:[#allocation5 + $0x3c8] sm:$0xff]
    %v537 = vld [vmem:[#allocation5 + $0x3d0] sm:$0xff]
    %v538 = vld [vmem:[#allocation5 + $0x3d8] sm:$0xff]
    %v539 = vld [vmem:[#allocation5 + $0x3e0] sm:$0xff]
    %v540 = vld [vmem:[#allocation5 + $0x3e8] sm:$0xff]
    %v541 = vld [vmem:[#allocation5 + $0x3f0] sm:$0xff]
    %v542 = vld [vmem:[#allocation5 + $0x3f8] sm:$0xff]
    %v543 = vld [vmem:[#allocation5 + $0x400] sm:$0xff]
    %v544 = vld [vmem:[#allocation5 + $0x408] sm:$0xff]
    %v545 = vld [vmem:[#allocation5 + $0x410] sm:$0xff]
    %v546 = vld [vmem:[#allocation5 + $0x418] sm:$0xff]
    %v547 = vld [vmem:[#allocation5 + $0x420] sm:$0xff]
    %v548 = vld [vmem:[#allocation5 + $0x428] sm:$0xff]
    %v549 = vld [vmem:[#allocation5 + $0x430] sm:$0xff]
    %v550 = vld [vmem:[#allocation5 + $0x438] sm:$0xff]
    %v551 = vld [vmem:[#allocation5 + $0x440] sm:$0xff]
    %v552 = vld [vmem:[#allocation5 + $0x448] sm:$0xff]
    %v553 = vld [vmem:[#allocation5 + $0x450] sm:$0xff]
    %v554 = vld [vmem:[#allocation5 + $0x458] sm:$0xff]
    %v555 = vld [vmem:[#allocation5 + $0x460] sm:$0xff]
    %v556 = vld [vmem:[#allocation5 + $0x468] sm:$0xff]
    %v557 = vld [vmem:[#allocation5 + $0x470] sm:$0xff]
    %v558 = vld [vmem:[#allocation5 + $0x478] sm:$0xff]
    %v559 = vld [vmem:[#allocation5 + $0x480] sm:$0xff]
    %v560 = vld [vmem:[#allocation5 + $0x488] sm:$0xff]
    %v561 = vld [vmem:[#allocation5 + $0x490] sm:$0xff]
    %v562 = vld [vmem:[#allocation5 + $0x498] sm:$0xff]
    %v563 = vld [vmem:[#allocation5 + $0x4a0] sm:$0xff]
    %v564 = vld [vmem:[#allocation5 + $0x4a8] sm:$0xff]
    %v565 = vld [vmem:[#allocation5 + $0x4b0] sm:$0xff]
    %v566 = vld [vmem:[#allocation5 + $0x4b8] sm:$0xff]
    %v567 = vld [vmem:[#allocation5 + $0x4c0] sm:$0xff]
    %v568 = vld [vmem:[#allocation5 + $0x4c8] sm:$0xff]
    %v569 = vld [vmem:[#allocation5 + $0x4d0] sm:$0xff]
    %v570 = vld [vmem:[#allocation5 + $0x4d8] sm:$0xff]
    %v571 = vld [vmem:[#allocation5 + $0x4e0] sm:$0xff]
    %v572 = vld [vmem:[#allocation5 + $0x4e8] sm:$0xff]
    %v573 = vld [vmem:[#allocation5 + $0x4f0] sm:$0xff]
    %v574 = vld [vmem:[#allocation5 + $0x4f8] sm:$0xff]
    %v575 = vld [vmem:[#allocation5 + $0x500] sm:$0xff]
    %v576 = vld [vmem:[#allocation5 + $0x508] sm:$0xff]
    %v577 = vld [vmem:[#allocation5 + $0x510] sm:$0xff]
    %v578 = vld [vmem:[#allocation5 + $0x518] sm:$0xff]
    %v579 = vld [vmem:[#allocation5 + $0x520] sm:$0xff]
    %v580 = vld [vmem:[#allocation5 + $0x528] sm:$0xff]
    %v581 = vld [vmem:[#allocation5 + $0x530] sm:$0xff]
    %v582 = vld [vmem:[#allocation5 + $0x538] sm:$0xff]
    %v583 = vld [vmem:[#allocation5 + $0x540] sm:$0xff]
    %v584 = vld [vmem:[#allocation5 + $0x548] sm:$0xff]
    %v585 = vld [vmem:[#allocation5 + $0x550] sm:$0xff]
    %v586 = vld [vmem:[#allocation5 + $0x558] sm:$0xff]
    %v587 = vld [vmem:[#allocation5 + $0x560] sm:$0xff]
    %v588 = vld [vmem:[#allocation5 + $0x568] sm:$0xff]
    %v589 = vld [vmem:[#allocation5 + $0x570] sm:$0xff]
    %v590 = vld [vmem:[#allocation5 + $0x578] sm:$0xff]
    %v591 = vld [vmem:[#allocation5 + $0x580] sm:$0xff]
    %v592 = vld [vmem:[#allocation5 + $0x588] sm:$0xff]
    %v593 = vld [vmem:[#allocation5 + $0x590] sm:$0xff]
    %v594 = vld [vmem:[#allocation5 + $0x598] sm:$0xff]
    %v595 = vld [vmem:[#allocation5 + $0x5a0] sm:$0xff]
    %v596 = vld [vmem:[#allocation5 + $0x5a8] sm:$0xff]
    %v597 = vld [vmem:[#allocation5 + $0x5b0] sm:$0xff]
    %v598 = vld [vmem:[#allocation5 + $0x5b8] sm:$0xff]
    %v599 = vld [vmem:[#allocation5 + $0x5c0] sm:$0xff]
    %v600 = vld [vmem:[#allocation5 + $0x5c8] sm:$0xff]
    %v601 = vld [vmem:[#allocation5 + $0x5d0] sm:$0xff]
    %v602 = vld [vmem:[#allocation5 + $0x5d8] sm:$0xff]
    %v603 = vld [vmem:[#allocation5 + $0x5e0] sm:$0xff]
    %v604 = vld [vmem:[#allocation5 + $0x5e8] sm:$0xff]
    %v605 = vld [vmem:[#allocation5 + $0x5f0] sm:$0xff]
    %v606 = vld [vmem:[#allocation5 + $0x5f8] sm:$0xff]
    %v607 = vld [vmem:[%s3] sm:$0x3]
    %v609 = vlaneseq
    %v610 = vshrl.u32 %v609, 7
    %v611 = vsub.s32 0, %v610
    %v612 = vrot.slane %v607, %v611
    %v613 = vlaneseq
    %v614 = vshrl.u32 %v613, 7
    %v615 = vsub.s32 1, %v614
    %v616 = vrot.slane %v607, %v615
    %v631 = vrot.slane %v409, 7
    %vm632 = vcmask 1041409
    %v633 = vsel %vm632, %v631, %v402
    %v634 = vrot.slane %v410, 7
    %v635 = vsel %vm632, %v634, %v403
    %v636 = vrot.slane %v411, 7
    %v637 = vsel %vm632, %v636, %v404
    %v638 = vrot.slane %v412, 7
    %v639 = vsel %vm632, %v638, %v405
    %v640 = vrot.slane %v413, 7
    %v641 = vsel %vm632, %v640, %v406
    %v642 = vrot.slane %v414, 7
    %v643 = vsel %vm632, %v642, %v407
    %650 = vmatprep.subr.mxu0 %v416
    %651 = vmatpush1.msra.mxu0 %v415
    %652 = vmatprep.subr.mxu0 %v418
    %653 = vmatpush1.msra.mxu0 %v417
    %654 = vmatprep.subr.mxu0 %v420
    %655 = vmatpush1.msra.mxu0 %v419
    %656 = vmatprep.subr.mxu0 %v422
    %657 = vmatpush1.msra.mxu0 %v421
    %658 = vmatprep.subr.mxu0 %v424
    %659 = vmatpush1.msra.mxu0 %v423
    %660 = vmatprep.subr.mxu0 %v426
    %661 = vmatpush1.msra.mxu0 %v425
    %662 = vmatprep.subr.mxu0 %v428
    %663 = vmatpush1.msra.mxu0 %v427
    %664 = vmatprep.subr.mxu0 %v430
    %665 = vmatpush1.msra.mxu0 %v429
    %666 = vmatprep.subr.mxu0 %v432
    %667 = vmatpush1.msra.mxu0 %v431
    %668 = vmatprep.subr.mxu0 %v434
    %669 = vmatpush1.msra.mxu0 %v433
    %670 = vmatprep.subr.mxu0 %v436
    %671 = vmatpush1.msra.mxu0 %v435
    %672 = vmatprep.subr.mxu0 %v438
    %673 = vmatpush1.msra.mxu0 %v437
    %674 = vmatprep.subr.mxu0 %v440
    %675 = vmatpush1.msra.mxu0 %v439
    %676 = vmatprep.subr.mxu0 %v442
    %677 = vmatpush1.msra.mxu0 %v441
    %678 = vmatprep.subr.mxu0 %v444
    %679 = vmatpush1.msra.mxu0 %v443
    %680 = vmatprep.subr.mxu0 %v446
    %681 = vmatpush1.msra.mxu0 %v445
    %682 = vmatprep.subr.mxu0 %v448
    %683 = vmatpush1.msra.mxu0 %v447
    %684 = vmatprep.subr.mxu0 %v450
    %685 = vmatpush1.msra.mxu0 %v449
    %686 = vmatprep.subr.mxu0 %v452
    %687 = vmatpush1.msra.mxu0 %v451
    %688 = vmatprep.subr.mxu0 %v454
    %689 = vmatpush1.msra.mxu0 %v453
    %690 = vmatprep.subr.mxu0 %v456
    %691 = vmatpush1.msra.mxu0 %v455
    %692 = vmatprep.subr.mxu0 %v458
    %693 = vmatpush1.msra.mxu0 %v457
    %694 = vmatprep.subr.mxu0 %v460
    %695 = vmatpush1.msra.mxu0 %v459
    %696 = vmatprep.subr.mxu0 %v462
    %697 = vmatpush1.msra.mxu0 %v461
    %698 = vmatprep.subr.mxu0 %v464
    %699 = vmatpush1.msra.mxu0 %v463
    %700 = vmatprep.subr.mxu0 %v466
    %701 = vmatpush1.msra.mxu0 %v465
    %702 = vmatprep.subr.mxu0 %v468
    %703 = vmatpush1.msra.mxu0 %v467
    %704 = vmatprep.subr.mxu0 %v470
    %705 = vmatpush1.msra.mxu0 %v469
    %706 = vmatprep.subr.mxu0 %v472
    %707 = vmatpush1.msra.mxu0 %v471
    %708 = vmatprep.subr.mxu0 %v474
    %709 = vmatpush1.msra.mxu0 %v473
    %710 = vmatprep.subr.mxu0 %v476
    %711 = vmatpush1.msra.mxu0 %v475
    %712 = vmatprep.subr.mxu0 %v478
    %713 = vmatpush1.msra.mxu0 %v477
    %714 = vmatprep.mubr.f32.mxu0 %v635
    %715 = vmatmul.mubr.f32.gmra.mrb[0].mxu0 %v633
    %v716 = vpop.f32.mrb[0].mxu0
    %v717 = vadd.f32 %v612, %v716
    %v718 = vpop.f32.mrb[0].mxu0
    %v719 = vadd.f32 %v616, %v718
    %720 = vdwg.mxu0
    %721 = vmatprep.subr.mxu0 %v480
    %722 = vmatpush1.msra.mxu0 %v479
    %723 = vmatprep.subr.mxu0 %v482
    %724 = vmatpush1.msra.mxu0 %v481
    %725 = vmatprep.subr.mxu0 %v484
    %726 = vmatpush1.msra.mxu0 %v483
    %727 = vmatprep.subr.mxu0 %v486
    %728 = vmatpush1.msra.mxu0 %v485
    %729 = vmatprep.subr.mxu0 %v488
    %730 = vmatpush1.msra.mxu0 %v487
    %731 = vmatprep.subr.mxu0 %v490
    %732 = vmatpush1.msra.mxu0 %v489
    %733 = vmatprep.subr.mxu0 %v492
    %734 = vmatpush1.msra.mxu0 %v491
    %735 = vmatprep.subr.mxu0 %v494
    %736 = vmatpush1.msra.mxu0 %v493
    %737 = vmatprep.subr.mxu0 %v496
    %738 = vmatpush1.msra.mxu0 %v495
    %739 = vmatprep.subr.mxu0 %v498
    %740 = vmatpush1.msra.mxu0 %v497
    %741 = vmatprep.subr.mxu0 %v500
    %742 = vmatpush1.msra.mxu0 %v499
    %743 = vmatprep.subr.mxu0 %v502
    %744 = vmatpush1.msra.mxu0 %v501
    %745 = vmatprep.subr.mxu0 %v504
    %746 = vmatpush1.msra.mxu0 %v503
    %747 = vmatprep.subr.mxu0 %v506
    %748 = vmatpush1.msra.mxu0 %v505
    %749 = vmatprep.subr.mxu0 %v508
    %750 = vmatpush1.msra.mxu0 %v507
    %751 = vmatprep.subr.mxu0 %v510
    %752 = vmatpush1.msra.mxu0 %v509
    %753 = vmatprep.subr.mxu0 %v512
    %754 = vmatpush1.msra.mxu0 %v511
    %755 = vmatprep.subr.mxu0 %v514
    %756 = vmatpush1.msra.mxu0 %v513
    %757 = vmatprep.subr.mxu0 %v516
    %758 = vmatpush1.msra.mxu0 %v515
    %759 = vmatprep.subr.mxu0 %v518
    %760 = vmatpush1.msra.mxu0 %v517
    %761 = vmatprep.subr.mxu0 %v520
    %762 = vmatpush1.msra.mxu0 %v519
    %763 = vmatprep.subr.mxu0 %v522
    %764 = vmatpush1.msra.mxu0 %v521
    %765 = vmatprep.subr.mxu0 %v524
    %766 = vmatpush1.msra.mxu0 %v523
    %767 = vmatprep.subr.mxu0 %v526
    %768 = vmatpush1.msra.mxu0 %v525
    %769 = vmatprep.subr.mxu0 %v528
    %770 = vmatpush1.msra.mxu0 %v527
    %771 = vmatprep.subr.mxu0 %v530
    %772 = vmatpush1.msra.mxu0 %v529
    %773 = vmatprep.subr.mxu0 %v532
    %774 = vmatpush1.msra.mxu0 %v531
    %775 = vmatprep.subr.mxu0 %v534
    %776 = vmatpush1.msra.mxu0 %v533
    %777 = vmatprep.subr.mxu0 %v536
    %778 = vmatpush1.msra.mxu0 %v535
    %779 = vmatprep.subr.mxu0 %v538
    %780 = vmatpush1.msra.mxu0 %v537
    %781 = vmatprep.subr.mxu0 %v540
    %782 = vmatpush1.msra.mxu0 %v539
    %783 = vmatprep.subr.mxu0 %v542
    %784 = vmatpush1.msra.mxu0 %v541
    %785 = vmatprep.mubr.f32.mxu0 %v639
    %786 = vmatmul.mubr.f32.gmra.mrb[0].mxu0 %v637
    %v787 = vpop.f32.mrb[0].mxu0
    %v788 = vadd.f32 %v717, %v787
    %v789 = vpop.f32.mrb[0].mxu0
    %v790 = vadd.f32 %v719, %v789
    %791 = vdwg.mxu0
    %792 = vmatprep.subr.mxu0 %v544
    %793 = vmatpush1.msra.mxu0 %v543
    %794 = vmatprep.subr.mxu0 %v546
    %795 = vmatpush1.msra.mxu0 %v545
    %796 = vmatprep.subr.mxu0 %v548
    %797 = vmatpush1.msra.mxu0 %v547
    %798 = vmatprep.subr.mxu0 %v550
    %799 = vmatpush1.msra.mxu0 %v549
    %800 = vmatprep.subr.mxu0 %v552
    %801 = vmatpush1.msra.mxu0 %v551
    %802 = vmatprep.subr.mxu0 %v554
    %803 = vmatpush1.msra.mxu0 %v553
    %804 = vmatprep.subr.mxu0 %v556
    %805 = vmatpush1.msra.mxu0 %v555
    %806 = vmatprep.subr.mxu0 %v558
    %807 = vmatpush1.msra.mxu0 %v557
    %808 = vmatprep.subr.mxu0 %v560
    %809 = vmatpush1.msra.mxu0 %v559
    %810 = vmatprep.subr.mxu0 %v562
    %811 = vmatpush1.msra.mxu0 %v561
    %812 = vmatprep.subr.mxu0 %v564
    %813 = vmatpush1.msra.mxu0 %v563
    %814 = vmatprep.subr.mxu0 %v566
    %815 = vmatpush1.msra.mxu0 %v565
    %816 = vmatprep.subr.mxu0 %v568
    %817 = vmatpush1.msra.mxu0 %v567
    %818 = vmatprep.subr.mxu0 %v570
    %819 = vmatpush1.msra.mxu0 %v569
    %820 = vmatprep.subr.mxu0 %v572
    %821 = vmatpush1.msra.mxu0 %v571
    %822 = vmatprep.subr.mxu0 %v574
    %823 = vmatpush1.msra.mxu0 %v573
    %824 = vmatprep.subr.mxu0 %v576
    %825 = vmatpush1.msra.mxu0 %v575
    %826 = vmatprep.subr.mxu0 %v578
    %827 = vmatpush1.msra.mxu0 %v577
    %828 = vmatprep.subr.mxu0 %v580
    %829 = vmatpush1.msra.mxu0 %v579
    %830 = vmatprep.subr.mxu0 %v582
    %831 = vmatpush1.msra.mxu0 %v581
    %832 = vmatprep.subr.mxu0 %v584
    %833 = vmatpush1.msra.mxu0 %v583
    %834 = vmatprep.subr.mxu0 %v586
    %835 = vmatpush1.msra.mxu0 %v585
    %836 = vmatprep.subr.mxu0 %v588
    %837 = vmatpush1.msra.mxu0 %v587
    %838 = vmatprep.subr.mxu0 %v590
    %839 = vmatpush1.msra.mxu0 %v589
    %840 = vmatprep.subr.mxu0 %v592
    %841 = vmatpush1.msra.mxu0 %v591
    %842 = vmatprep.subr.mxu0 %v594
    %843 = vmatpush1.msra.mxu0 %v593
    %844 = vmatprep.subr.mxu0 %v596
    %845 = vmatpush1.msra.mxu0 %v595
    %846 = vmatprep.subr.mxu0 %v598
    %847 = vmatpush1.msra.mxu0 %v597
    %848 = vmatprep.subr.mxu0 %v600
    %849 = vmatpush1.msra.mxu0 %v599
    %850 = vmatprep.subr.mxu0 %v602
    %851 = vmatpush1.msra.mxu0 %v601
    %852 = vmatprep.subr.mxu0 %v604
    %853 = vmatpush1.msra.mxu0 %v603
    %854 = vmatprep.subr.mxu0 %v606
    %855 = vmatpush1.msra.mxu0 %v605
    %856 = vmatprep.mubr.f32.mxu0 %v643
    %857 = vmatmul.mubr.f32.gmra.mrb[0].mxu0 %v641
    %v858 = vpop.f32.mrb[0].mxu0
    %v859 = vadd.f32 %v788, %v858
    %v860 = vpop.f32.mrb[0].mxu0
    %v861 = vadd.f32 %v790, %v860
    %862 = vdwg.mxu0
    %v863 = vmax.f32 %v859, 0.0
    %v864 = vmax.f32 %v861, 0.0
    %v865 = vld [vmem:[#allocation7] sm:$0xff]
    %v866 = vld [vmem:[#allocation7 + $0x8] sm:$0xff]
    %v867 = vld [vmem:[#allocation7 + $0x10] sm:$0xff]
    %v868 = vld [vmem:[#allocation7 + $0x18] sm:$0xff]
    %v869 = vld [vmem:[#allocation7 + $0x20] sm:$0xff]
    %v870 = vld [vmem:[#allocation7 + $0x28] sm:$0xff]
    %v871 = vld [vmem:[#allocation7 + $0x30] sm:$0xff]
    %v872 = vld [vmem:[#allocation7 + $0x38] sm:$0xff]
    %v873 = vld [vmem:[#allocation7 + $0x40] sm:$0xff]
    %v874 = vld [vmem:[#allocation7 + $0x48] sm:$0xff]
    %v875 = vld [vmem:[#allocation7 + $0x50] sm:$0xff]
    %v876 = vld [vmem:[#allocation7 + $0x58] sm:$0xff]
    %v877 = vld [vmem:[#allocation7 + $0x60] sm:$0xff]
    %v878 = vld [vmem:[#allocation7 + $0x68] sm:$0xff]
    %v879 = vld [vmem:[#allocation7 + $0x70] sm:$0xff]
    %v880 = vld [vmem:[#allocation7 + $0x78] sm:$0xff]
    %v881 = vld [vmem:[#allocation7 + $0x80] sm:$0xff]
    %v882 = vld [vmem:[#allocation7 + $0x88] sm:$0xff]
    %v883 = vld [vmem:[#allocation7 + $0x90] sm:$0xff]
    %v884 = vld [vmem:[#allocation7 + $0x98] sm:$0xff]
    %v885 = vld [vmem:[#allocation7 + $0xa0] sm:$0xff]
    %v886 = vld [vmem:[#allocation7 + $0xa8] sm:$0xff]
    %v887 = vld [vmem:[#allocation7 + $0xb0] sm:$0xff]
    %v888 = vld [vmem:[#allocation7 + $0xb8] sm:$0xff]
    %v889 = vld [vmem:[#allocation7 + $0xc0] sm:$0xff]
    %v890 = vld [vmem:[#allocation7 + $0xc8] sm:$0xff]
    %v891 = vld [vmem:[#allocation7 + $0xd0] sm:$0xff]
    %v892 = vld [vmem:[#allocation7 + $0xd8] sm:$0xff]
    %v893 = vld [vmem:[#allocation7 + $0xe0] sm:$0xff]
    %v894 = vld [vmem:[#allocation7 + $0xe8] sm:$0xff]
    %v895 = vld [vmem:[#allocation7 + $0xf0] sm:$0xff]
    %v896 = vld [vmem:[#allocation7 + $0xf8] sm:$0xff]
    %v897 = vld [vmem:[%s5] sm:$0x1]
    %v899 = vlaneseq
    %v900 = vshrl.u32 %v899, 7
    %v901 = vsub.s32 0, %v900
    %v902 = vrot.slane %v897, %v901
    %904 = vmatprep.subr.mxu0 0.0
    %905 = vmatpush1.msra.mxu0 %v865
    %906 = vmatprep.subr.mxu0 0.0
    %907 = vmatpush1.msra.mxu0 %v866
    %908 = vmatprep.subr.mxu0 0.0
    %909 = vmatpush1.msra.mxu0 %v867
    %910 = vmatprep.subr.mxu0 0.0
    %911 = vmatpush1.msra.mxu0 %v868
    %912 = vmatprep.subr.mxu0 0.0
    %913 = vmatpush1.msra.mxu0 %v869
    %914 = vmatprep.subr.mxu0 0.0
    %915 = vmatpush1.msra.mxu0 %v870
    %916 = vmatprep.subr.mxu0 0.0
    %917 = vmatpush1.msra.mxu0 %v871
    %918 = vmatprep.subr.mxu0 0.0
    %919 = vmatpush1.msra.mxu0 %v872
    %920 = vmatprep.subr.mxu0 0.0
    %921 = vmatpush1.msra.mxu0 %v873
    %922 = vmatprep.subr.mxu0 0.0
    %923 = vmatpush1.msra.mxu0 %v874
    %924 = vmatprep.subr.mxu0 0.0
    %925 = vmatpush1.msra.mxu0 %v875
    %926 = vmatprep.subr.mxu0 0.0
    %927 = vmatpush1.msra.mxu0 %v876
    %928 = vmatprep.subr.mxu0 0.0
    %929 = vmatpush1.msra.mxu0 %v877
    %930 = vmatprep.subr.mxu0 0.0
    %931 = vmatpush1.msra.mxu0 %v878
    %932 = vmatprep.subr.mxu0 0.0
    %933 = vmatpush1.msra.mxu0 %v879
    %934 = vmatprep.subr.mxu0 0.0
    %935 = vmatpush1.msra.mxu0 %v880
    %936 = vmatprep.subr.mxu0 0.0
    %937 = vmatpush1.msra.mxu0 %v881
    %938 = vmatprep.subr.mxu0 0.0
    %939 = vmatpush1.msra.mxu0 %v882
    %940 = vmatprep.subr.mxu0 0.0
    %941 = vmatpush1.msra.mxu0 %v883
    %942 = vmatprep.subr.mxu0 0.0
    %943 = vmatpush1.msra.mxu0 %v884
    %944 = vmatprep.subr.mxu0 0.0
    %945 = vmatpush1.msra.mxu0 %v885
    %946 = vmatprep.subr.mxu0 0.0
    %947 = vmatpush1.msra.mxu0 %v886
    %948 = vmatprep.subr.mxu0 0.0
    %949 = vmatpush1.msra.mxu0 %v887
    %950 = vmatprep.subr.mxu0 0.0
    %951 = vmatpush1.msra.mxu0 %v888
    %952 = vmatprep.subr.mxu0 0.0
    %953 = vmatpush1.msra.mxu0 %v889
    %954 = vmatprep.subr.mxu0 0.0
    %955 = vmatpush1.msra.mxu0 %v890
    %956 = vmatprep.subr.mxu0 0.0
    %957 = vmatpush1.msra.mxu0 %v891
    %958 = vmatprep.subr.mxu0 0.0
    %959 = vmatpush1.msra.mxu0 %v892
    %960 = vmatprep.subr.mxu0 0.0
    %961 = vmatpush1.msra.mxu0 %v893
    %962 = vmatprep.subr.mxu0 0.0
    %963 = vmatpush1.msra.mxu0 %v894
    %964 = vmatprep.subr.mxu0 0.0
    %965 = vmatpush1.msra.mxu0 %v895
    %966 = vmatprep.subr.mxu0 0.0
    %967 = vmatpush1.msra.mxu0 %v896
    %968 = vmatprep.mubr.f32.mxu0 %v864
    %969 = vmatmul.mubr.f32.gmra.mrb[0].mxu0 %v863
    %v970 = vpop.f32.mrb[0].mxu0
    %v971 = vadd.f32 %v902, %v970
    %v972 = vpop.f32.mrb[0].mxu0
    %973 = vdwg.mxu0
    %974 = vst [vmem:[#allocation8] sm:$0x3] %v971
    // Predicated region
    $region38: #{tpu_custom_call.1} parent=1 // pred_check
      _
    $region39: #{tpu_custom_call.1} parent=1 // pred_check_branch
      %976 = sbr.rel (0) target = $region41
    $region40: #{tpu_custom_call.1} parent=1 // pred_region
      %s978 = ssub.s32 32, 32
      %979 = vsyncadd [#allocation4], %s978
      %s981 = sshll.u32 [#allocation8], 4
      %s982 = int_to_ptr.vmem [resolvable:$true] %s981
      %984 = dma.vmem_to_hbm [thread:$0]  %s982, 32, %s6, [#allocation4]
    $region41: #{tpu_custom_call.1} parent=1 // pred_fallthru
      _
    // Predicated region
    $region42: #{tpu_custom_call.1} parent=1 // pred_check
      _
    $region43: #{tpu_custom_call.1} parent=1 // pred_check_branch
      %986 = sbr.rel (0) target = $region45
    $region44: #{tpu_custom_call.1} parent=1 // pred_region
      %987 = dma.done [#allocation4], 32
    $region45: #{tpu_custom_call.1} parent=1 // pred_fallthru
      _
    %988 = vsyncpa [#allocation3], 1
    %989 = vsyncpa [#allocation6], 1
    %990 = vsyncpa [#allocation4], 1

</llo_original>
